<compile_context>
chip_gen: v7x
topology: tpu7x:2x2x1
jax: 0.10.0
libtpu: 0.0.40
codegen_flags: <defaults>
</compile_context>

<pallas_src>
import functools

import jax
import jax.numpy as jnp
from jax.experimental import pallas as pl
from jax.experimental.pallas import tpu as pltpu


HIDDEN = 128   # approximator hidden width
FEAT = 150     # skeleton values per row fed to the approximator
TM_MAX = 2048  # row-tile cap (sized for the 32 MiB scoped VMEM on v7x)


def _round_up(x, m):
    return ((x + m - 1) // m) * m


def _negpck_kernel(pred_ref, gt_ref, w1p_ref, w1g_ref, b1_ref,
                   w2_ref, b2_ref, w3_ref, b3_ref, part_ref,
                   *, n_rows, tm, feat, needs_mask):
    """One row-tile of the PCK approximator; emits one per-tile partial sum."""
    i = pl.program_id(0)

    # Drop the counter column + cast to bf16 *inside* the kernel (VMEM-local VPU
    # work): the raw f32 rows are read from HBM exactly once.
    pred = pred_ref[:, :feat].astype(jnp.bfloat16)
    gt = gt_ref[:, :feat].astype(jnp.bfloat16)

    # ---- layer 1: split-weight matmul (avoids concat(pred, gt)) -------------
    h1 = jnp.dot(pred, w1p_ref[...], preferred_element_type=jnp.float32)
    h1 = h1 + jnp.dot(gt, w1g_ref[...], preferred_element_type=jnp.float32)
    h1 = jnp.maximum(h1 + b1_ref[...], 0.0)                     # (TM, H) f32

    # ---- layer 2 -------------------------------------------------------------
    h2 = jnp.dot(h1.astype(jnp.bfloat16), w2_ref[...],
                 preferred_element_type=jnp.float32)
    h2 = jnp.maximum(h2 + b2_ref[...], 0.0)                     # (TM, H) f32

    # ---- layer 3: width-1 output -> VPU multiply + lane reduce (skip MXU) ----
    logits = jnp.sum(h2 * w3_ref[...], axis=-1, keepdims=True) + b3_ref[0, 0]
    outputs = jax.nn.sigmoid(logits)                             # (TM, 1) f32

    def _store(partial):
        # Splat the partial sum into this tile's own (8,128)-aligned block:
        # lane-dense unmasked store; each grid step owns its block so the grid
        # axis stays "parallel" (megacore on v7x).
        part_ref[...] = jnp.broadcast_to(partial, part_ref.shape)

    if needs_mask:
        # Only the last, partially filled tile needs row masking.
        last = pl.num_programs(0) - 1

        @pl.when(i != last)
        def _():
            _store(jnp.sum(outputs))

        @pl.when(i == last)
        def _():
            row_ids = i * tm + jax.lax.broadcasted_iota(jnp.int32, outputs.shape, 0)
            # OOB rows of the padded tile may hold unspecified data; the select
            # (not arithmetic) masking keeps the sum NaN-safe and unbiased.
            _store(jnp.sum(jnp.where(row_ids < n_rows, outputs, 0.0)))
    else:
        _store(jnp.sum(outputs))


def init_approximator_params(key, feat=FEAT, hidden=HIDDEN):
    k1, k2, k3 = jax.random.split(key, 3)
    in_dim = 2 * feat
    w1 = jax.random.normal(k1, (in_dim, hidden), jnp.float32) * (1.0 / jnp.sqrt(in_dim))
    b1 = jnp.zeros((1, hidden), jnp.float32)
    w2 = jax.random.normal(k2, (hidden, hidden), jnp.float32) * (1.0 / jnp.sqrt(hidden))
    b2 = jnp.zeros((1, hidden), jnp.float32)
    w3 = jax.random.normal(k3, (hidden, 1), jnp.float32) * (1.0 / jnp.sqrt(hidden))
    b3 = jnp.zeros((1, 1), jnp.float32)
    return (w1, b1, w2, b2, w3, b3)


def _prepare_rows(pred_skel, gt_skel, feat):
    """Rows fed to the approximator.

    Non-chunked path (keypoints_num <= 151): keep the counter column and just
    reshape (free) -- the kernel drops it.  Chunked path (keypoints_num > 151):
    strip the counter column and split into 150-wide chunks (mean over all rows
    is permutation-invariant, so the original permute(2,0,1,3) is not needed).
    """
    B, S, K = pred_skel.shape
    if K > feat + 1:
        # TODO(synk): mirrors the original contract K - 1 == (K // 150) * 150.
        chunks = K // feat
        pred_rows = pred_skel[:, :, :K - 1].reshape(B * S * chunks, feat)
        gt_rows = gt_skel[:, :, :K - 1].reshape(B * S * chunks, feat)
    else:
        pred_rows = pred_skel.reshape(B * S, K)
        gt_rows = gt_skel.reshape(B * S, K)
    return pred_rows, gt_rows


@jax.jit
def negpck_loss(pred_skel, gt_skel, params):
    """NegPCKLoss.forward."""
    w1, b1, w2, b2, w3, b3 = params
    feat = w1.shape[0] // 2
    hidden = w1.shape[1]

    pred_rows, gt_rows = _prepare_rows(pred_skel, gt_skel, feat)
    n_rows, f_in = pred_rows.shape

    # Weights: tiny one-time bf16 casts for the MXU operands; everything else f32.
    w1p = w1[:feat].astype(jnp.bfloat16)
    w1g = w1[feat:].astype(jnp.bfloat16)
    w2b = w2.astype(jnp.bfloat16)
    b1f = b1.reshape(1, hidden).astype(jnp.float32)
    b2f = b2.reshape(1, hidden).astype(jnp.float32)
    w3r = w3.reshape(1, hidden).astype(jnp.float32)
    b3s = b3.reshape(1, 1).astype(jnp.float32)

    # Row tile: large to amortize per-step overhead, capped for v7x scoped VMEM;
    # sized so num_tiles >= 2 whenever possible (both v7x TensorCores busy);
    # rounded to a multiple of 16 (bf16 sublane packing).
    half = (n_rows + 1) // 2
    tm = min(TM_MAX, _round_up(max(half, 8), 16))
    num_tiles = pl.cdiv(n_rows, tm)
    needs_mask = (n_rows % tm) != 0

    kernel = functools.partial(_negpck_kernel, n_rows=n_rows, tm=tm,
                               feat=feat, needs_mask=needs_mask)

    flops = 2 * n_rows * (2 * feat * hidden + hidden * hidden + hidden)
    bytes_accessed = (2 * n_rows * f_in * 4                        # f32 pred + gt (read once)
                      + (2 * feat * hidden + hidden * hidden) * 2  # bf16 weights
                      + num_tiles * 8 * 128 * 4)                   # partial writeback
    cost = pl.CostEstimate(flops=flops, transcendentals=n_rows,
                           bytes_accessed=bytes_accessed)

    resident = lambda shape: pl.BlockSpec(shape, lambda i: (0, 0))

    partials = pl.pallas_call(
        kernel,
        out_shape=jax.ShapeDtypeStruct((num_tiles * 8, 128), jnp.float32),
        grid_spec=pltpu.PrefetchScalarGridSpec(
            num_scalar_prefetch=0,
            grid=(num_tiles,),
            in_specs=[
                pl.BlockSpec((tm, f_in), lambda i: (i, 0)),   # raw f32 pred rows
                pl.BlockSpec((tm, f_in), lambda i: (i, 0)),   # raw f32 gt rows
                resident(w1p.shape), resident(w1g.shape), resident(b1f.shape),
                resident(w2b.shape), resident(b2f.shape),
                resident(w3r.shape), resident(b3s.shape),
            ],
            out_specs=pl.BlockSpec((8, 128), lambda i: (i, 0)),
        ),
        compiler_params=pltpu.CompilerParams(
            dimension_semantics=("parallel",),
            vmem_limit_bytes=32 * 1024 * 1024),
        cost_estimate=cost,
    )(pred_rows, gt_rows, w1p, w1g, b1f, w2b, b2f, w3r, b3s)

    # mean + (-log) epilogue in f32 on the tiny per-tile partial sums.
    tile_sums = partials.reshape(num_tiles, 8, 128)[:, 0, 0]
    mean_out = jnp.sum(tile_sums) / jnp.float32(n_rows)
    return -jnp.log(mean_out + 1e-8)


def negpck_loss_ref(pred_skel, gt_skel, params):
    """Pure-JAX reference (mirrors the kernel's bf16-matmul / f32-accumulate path)."""
    w1, b1, w2, b2, w3, b3 = params
    feat = w1.shape[0] // 2
    hidden = w1.shape[1]
    pred_rows, gt_rows = _prepare_rows(pred_skel, gt_skel, feat)

    p = pred_rows[:, :feat].astype(jnp.bfloat16)
    g = gt_rows[:, :feat].astype(jnp.bfloat16)
    h1 = (jnp.dot(p, w1[:feat].astype(jnp.bfloat16), preferred_element_type=jnp.float32)
          + jnp.dot(g, w1[feat:].astype(jnp.bfloat16), preferred_element_type=jnp.float32))
    h1 = jnp.maximum(h1 + b1.reshape(1, hidden), 0.0)
    h2 = jnp.dot(h1.astype(jnp.bfloat16), w2.astype(jnp.bfloat16),
                 preferred_element_type=jnp.float32)
    h2 = jnp.maximum(h2 + b2.reshape(1, hidden), 0.0)
    logits = jnp.sum(h2 * w3.reshape(1, hidden), axis=-1, keepdims=True) + b3.reshape(1, 1)
    out = jax.nn.sigmoid(logits)
    return -jnp.log(jnp.mean(out) + 1e-8)


if __name__ == "__main__":
    key = jax.random.PRNGKey(0)
    kp, k1, k2, k3, k4, k5, k6 = jax.random.split(key, 7)

    params = init_approximator_params(kp)

    # Case 1: module-consistent small shape (keypoints_num = 151:
    # 150 skeleton values + 1 counter column that gets dropped).
    B, S, K = 2, 8, 151
    pred1 = jax.random.normal(k1, (B, S, K), jnp.float32)
    gt1 = jax.random.normal(k2, (B, S, K), jnp.float32)
    loss1 = negpck_loss(pred1, gt1, params)
    jax.block_until_ready(loss1)
    ref1 = negpck_loss_ref(pred1, gt1, params)
    assert jnp.allclose(loss1, ref1, rtol=1e-4, atol=1e-4), (loss1, ref1)

    # Case 2: multi-tile + partially filled last tile (exercises the pl.when row
    # mask and the parallel per-tile partial-sum path).  N = 5*123 = 615 rows.
    B2, S2 = 5, 123
    pred2 = jax.random.normal(k3, (B2, S2, K), jnp.float32)
    gt2 = jax.random.normal(k4, (B2, S2, K), jnp.float32)
    loss2 = negpck_loss(pred2, gt2, params)
    jax.block_until_ready(loss2)
    ref2 = negpck_loss_ref(pred2, gt2, params)
    assert jnp.allclose(loss2, ref2, rtol=1e-4, atol=1e-4), (loss2, ref2)

    # Case 3: chunked path (keypoints_num > 151): K = 301 -> 2 chunks of 150.
    B3, S3, K3 = 2, 4, 301
    pred3 = jax.random.normal(k5, (B3, S3, K3), jnp.float32)
    gt3 = jax.random.normal(k6, (B3, S3, K3), jnp.float32)
    loss3 = negpck_loss(pred3, gt3, params)
    jax.block_until_ready(loss3)
    ref3 = negpck_loss_ref(pred3, gt3, params)
    assert jnp.allclose(loss3, ref3, rtol=1e-4, atol=1e-4), (loss3, ref3)

    print("KERNEL_OK")
</pallas_src>

<mosaic_0001>
module attributes {stable_mosaic.version = 11 : i64} {
  func.func @_negpck_kernel(%arg0: i32, %arg1: memref<16x151xf32, #tpu.memory_space<vmem>>, %arg2: memref<16x151xf32, #tpu.memory_space<vmem>>, %arg3: memref<150x128xbf16, #tpu.memory_space<vmem>>, %arg4: memref<150x128xbf16, #tpu.memory_space<vmem>>, %arg5: memref<1x128xf32, #tpu.memory_space<vmem>>, %arg6: memref<128x128xbf16, #tpu.memory_space<vmem>>, %arg7: memref<1x128xf32, #tpu.memory_space<vmem>>, %arg8: memref<1x128xf32, #tpu.memory_space<vmem>>, %arg9: memref<1x1xf32, #tpu.memory_space<vmem>>, %arg10: memref<8x128xf32, #tpu.memory_space<vmem>>) attributes {dimension_semantics = [#tpu.dimension_semantics<parallel>], iteration_bounds = array<i64: 1>, scalar_prefetch = 0 : i64, scratch_operands = 0 : i64, tpu.core_type = #tpu.core_type<tc>, window_params = [{transform_indices = @transform_0, window_bounds = array<i64: 16, 151>}, {transform_indices = @transform_1, window_bounds = array<i64: 16, 151>}, {pipeline_mode = #tpu.pipeline_mode<synchronous>, transform_indices = @transform_2, window_bounds = array<i64: 150, 128>}, {pipeline_mode = #tpu.pipeline_mode<synchronous>, transform_indices = @transform_3, window_bounds = array<i64: 150, 128>}, {pipeline_mode = #tpu.pipeline_mode<synchronous>, transform_indices = @transform_4, window_bounds = array<i64: 1, 128>}, {pipeline_mode = #tpu.pipeline_mode<synchronous>, transform_indices = @transform_5, window_bounds = array<i64: 128, 128>}, {pipeline_mode = #tpu.pipeline_mode<synchronous>, transform_indices = @transform_6, window_bounds = array<i64: 1, 128>}, {pipeline_mode = #tpu.pipeline_mode<synchronous>, transform_indices = @transform_7, window_bounds = array<i64: 1, 128>}, {pipeline_mode = #tpu.pipeline_mode<synchronous>, transform_indices = @transform_8, window_bounds = array<i64: 1, 1>}, {transform_indices = @transform_9, window_bounds = array<i64: 8, 128>}]} {
    %c0 = arith.constant 0 : index
    %c0_0 = arith.constant 0 : index
    %0 = vector.load %arg1[%c0, %c0_0] : memref<16x151xf32, #tpu.memory_space<vmem>>, vector<16x150xf32>
    %1 = arith.truncf %0 : vector<16x150xf32> to vector<16x150xbf16>
    %c0_1 = arith.constant 0 : index
    %c0_2 = arith.constant 0 : index
    %2 = vector.load %arg2[%c0_1, %c0_2] : memref<16x151xf32, #tpu.memory_space<vmem>>, vector<16x150xf32>
    %3 = arith.truncf %2 : vector<16x150xf32> to vector<16x150xbf16>
    %c0_3 = arith.constant 0 : index
    %c0_4 = arith.constant 0 : index
    %4 = vector.load %arg3[%c0_3, %c0_4] : memref<150x128xbf16, #tpu.memory_space<vmem>>, vector<150x128xbf16>
    %cst = arith.constant dense<0.000000e+00> : vector<16x128xf32>
    %5 = tpu.matmul %1, %4, %cst {dimension_numbers = #tpu.dot_dimension_numbers<[1], [0], [0], [1], [0, 0, 1, 1], [], []>} : vector<16x150xbf16>, vector<150x128xbf16>, vector<16x128xf32> -> vector<16x128xf32>
    %c0_5 = arith.constant 0 : index
    %c0_6 = arith.constant 0 : index
    %6 = vector.load %arg4[%c0_5, %c0_6] : memref<150x128xbf16, #tpu.memory_space<vmem>>, vector<150x128xbf16>
    %cst_7 = arith.constant dense<0.000000e+00> : vector<16x128xf32>
    %7 = tpu.matmul %3, %6, %cst_7 {dimension_numbers = #tpu.dot_dimension_numbers<[1], [0], [0], [1], [0, 0, 1, 1], [], []>} : vector<16x150xbf16>, vector<150x128xbf16>, vector<16x128xf32> -> vector<16x128xf32>
    %8 = arith.addf %5, %7 : vector<16x128xf32>
    %c0_8 = arith.constant 0 : index
    %c0_9 = arith.constant 0 : index
    %9 = vector.load %arg5[%c0_8, %c0_9] : memref<1x128xf32, #tpu.memory_space<vmem>>, vector<1x128xf32>
    %10 = vector.broadcast %9 : vector<1x128xf32> to vector<16x128xf32>
    %11 = arith.addf %8, %10 : vector<16x128xf32>
    %cst_10 = arith.constant 0.000000e+00 : f32
    %12 = vector.broadcast %cst_10 : f32 to vector<16x128xf32>
    %13 = arith.maximumf %11, %12 : vector<16x128xf32>
    %14 = arith.truncf %13 : vector<16x128xf32> to vector<16x128xbf16>
    %c0_11 = arith.constant 0 : index
    %c0_12 = arith.constant 0 : index
    %15 = vector.load %arg6[%c0_11, %c0_12] : memref<128x128xbf16, #tpu.memory_space<vmem>>, vector<128x128xbf16>
    %cst_13 = arith.constant dense<0.000000e+00> : vector<16x128xf32>
    %16 = tpu.matmul %14, %15, %cst_13 {dimension_numbers = #tpu.dot_dimension_numbers<[1], [0], [0], [1], [0, 0, 1, 1], [], []>} : vector<16x128xbf16>, vector<128x128xbf16>, vector<16x128xf32> -> vector<16x128xf32>
    %c0_14 = arith.constant 0 : index
    %c0_15 = arith.constant 0 : index
    %17 = vector.load %arg7[%c0_14, %c0_15] : memref<1x128xf32, #tpu.memory_space<vmem>>, vector<1x128xf32>
    %18 = vector.broadcast %17 : vector<1x128xf32> to vector<16x128xf32>
    %19 = arith.addf %16, %18 : vector<16x128xf32>
    %cst_16 = arith.constant 0.000000e+00 : f32
    %20 = vector.broadcast %cst_16 : f32 to vector<16x128xf32>
    %21 = arith.maximumf %19, %20 : vector<16x128xf32>
    %c0_17 = arith.constant 0 : index
    %c0_18 = arith.constant 0 : index
    %22 = vector.load %arg8[%c0_17, %c0_18] : memref<1x128xf32, #tpu.memory_space<vmem>>, vector<1x128xf32>
    %23 = vector.broadcast %22 : vector<1x128xf32> to vector<16x128xf32>
    %24 = arith.mulf %21, %23 : vector<16x128xf32>
    %cst_19 = arith.constant dense<0.000000e+00> : vector<16xf32>
    %25 = vector.multi_reduction <add>, %24, %cst_19 [1] : vector<16x128xf32> to vector<16xf32>
    %26 = vector.shape_cast %25 : vector<16xf32> to vector<16x1xf32>
    %c0_20 = arith.constant 0 : index
    %c0_21 = arith.constant 0 : index
    %27 = vector.load %arg9[%c0_20, %c0_21] : memref<1x1xf32, #tpu.memory_space<vmem>>, vector<1x1xf32>
    %28 = vector.extract %27[0, 0] : f32 from vector<1x1xf32>
    %29 = vector.broadcast %28 : f32 to vector<16x1xf32>
    %30 = arith.addf %26, %29 : vector<16x1xf32>
    %31 = arith.negf %30 : vector<16x1xf32>
    %32 = math.exp %31 : vector<16x1xf32>
    %cst_22 = arith.constant 1.000000e+00 : f32
    %33 = vector.broadcast %cst_22 : f32 to vector<16x1xf32>
    %34 = arith.addf %33, %32 : vector<16x1xf32>
    %35 = arith.divf %33, %34 : vector<16x1xf32>
    %36 = vector.shape_cast %35 : vector<16x1xf32> to vector<1x16x1xf32>
    %cst_23 = arith.constant dense<0.000000e+00> : vector<1xf32>
    %37 = vector.multi_reduction <add>, %36, %cst_23 [1, 2] : vector<1x16x1xf32> to vector<1xf32>
    %38 = vector.shape_cast %37 : vector<1xf32> to vector<1x1x1xf32>
    %39 = vector.extract %38[0, 0, 0] : f32 from vector<1x1x1xf32>
    %40 = vector.broadcast %39 : f32 to vector<8x128xf32>
    %c0_24 = arith.constant 0 : index
    %c0_25 = arith.constant 0 : index
    %41 = vector.load %arg10[%c0_24, %c0_25] : memref<8x128xf32, #tpu.memory_space<vmem>>, vector<8x128xf32>
    tpu.vector_store %arg10[%c0_24, %c0_25], %40 {strides = array<i32>} : memref<8x128xf32, #tpu.memory_space<vmem>>, vector<8x128xf32>,
    return
  }
  func.func @transform_0(%arg0: i32) -> (i32, i32) {
    %c0_i32 = arith.constant 0 : i32
    %c0_i32_0 = arith.constant 0 : i32
    return %arg0, %c0_i32 : i32, i32
  }
  func.func @transform_1(%arg0: i32) -> (i32, i32) {
    %c0_i32 = arith.constant 0 : i32
    %c0_i32_0 = arith.constant 0 : i32
    return %arg0, %c0_i32 : i32, i32
  }
  func.func @transform_2(%arg0: i32) -> (i32, i32) {
    %c0_i32 = arith.constant 0 : i32
    %c0_i32_0 = arith.constant 0 : i32
    %c0_i32_1 = arith.constant 0 : i32
    return %c0_i32, %c0_i32_0 : i32, i32
  }
  func.func @transform_3(%arg0: i32) -> (i32, i32) {
    %c0_i32 = arith.constant 0 : i32
    %c0_i32_0 = arith.constant 0 : i32
    %c0_i32_1 = arith.constant 0 : i32
    return %c0_i32, %c0_i32_0 : i32, i32
  }
  func.func @transform_4(%arg0: i32) -> (i32, i32) {
    %c0_i32 = arith.constant 0 : i32
    %c0_i32_0 = arith.constant 0 : i32
    %c0_i32_1 = arith.constant 0 : i32
    return %c0_i32, %c0_i32_0 : i32, i32
  }
  func.func @transform_5(%arg0: i32) -> (i32, i32) {
    %c0_i32 = arith.constant 0 : i32
    %c0_i32_0 = arith.constant 0 : i32
    %c0_i32_1 = arith.constant 0 : i32
    return %c0_i32, %c0_i32_0 : i32, i32
  }
  func.func @transform_6(%arg0: i32) -> (i32, i32) {
    %c0_i32 = arith.constant 0 : i32
    %c0_i32_0 = arith.constant 0 : i32
    %c0_i32_1 = arith.constant 0 : i32
    return %c0_i32, %c0_i32_0 : i32, i32
  }
  func.func @transform_7(%arg0: i32) -> (i32, i32) {
    %c0_i32 = arith.constant 0 : i32
    %c0_i32_0 = arith.constant 0 : i32
    %c0_i32_1 = arith.constant 0 : i32
    return %c0_i32, %c0_i32_0 : i32, i32
  }
  func.func @transform_8(%arg0: i32) -> (i32, i32) {
    %c0_i32 = arith.constant 0 : i32
    %c0_i32_0 = arith.constant 0 : i32
    %c0_i32_1 = arith.constant 0 : i32
    return %c0_i32, %c0_i32_0 : i32, i32
  }
  func.func @transform_9(%arg0: i32) -> (i32, i32) {
    %c0_i32 = arith.constant 0 : i32
    %c0_i32_0 = arith.constant 0 : i32
    return %arg0, %c0_i32 : i32, i32
  }
}

</mosaic_0001>

<llo_original>
// kernel: negpck_loss.1
$region0: #{negpck_loss.1}
  #allocation0 [shape = 'u32[]', space=smem, size = 0x4, offset = 0x4, fixed_abs, tag = 'smem constant byte address 0x4 - core index']
  #allocation1 [shape = 'u32[144,128]{1,0:T(1,128)}', space=vmem, size = 0x12000, scoped, tag = 'internal scratch']
  #allocation2 [shape = 'f32[1,1]{1,0:T(1,128)S(1)}', space=vmem, size = 0x200, scoped, tag = 'scoped memory for negpck_loss.1']
  %s0 = inlined_call_operand.vmem [shape: f32[16,151], index: 0, kind: input, shape index: {}]
  %s1 = inlined_call_operand.vmem [shape: f32[16,151], index: 1, kind: input, shape index: {}]
  %s2 = inlined_call_operand.vmem [shape: bf16[150,128], index: 2, kind: input, shape index: {}]
  %s3 = inlined_call_operand.vmem [shape: bf16[150,128], index: 3, kind: input, shape index: {}]
  %s4 = inlined_call_operand.vmem [shape: f32[1,128], index: 4, kind: input, shape index: {}]
  %s5 = inlined_call_operand.vmem [shape: bf16[128,128], index: 5, kind: input, shape index: {}]
  %s6 = inlined_call_operand.vmem [shape: f32[1,128], index: 6, kind: input, shape index: {}]
  %s7 = inlined_call_operand.vmem [shape: f32[1,128], index: 7, kind: input, shape index: {}]
  %s8 = inlined_call_operand.<no memory space> [shape: f32[1,1], index: 8, kind: input, shape index: {}]
  %s9 = inlined_call_operand.vmem [shape: f32[8,128], index: 9, kind: output, shape index: {}]
  %s10 = sld [smem:[#allocation0]]
  $region46: #{negpck_loss.1} parent=0
    _
  %s12 = ssub.s32 1, %s10
  %s13 = scalar_select 0, %s12, %s10
  %v14 = vstv %s8
  %15 = vst [vmem:[#allocation2] sm:$0x1] %v14
  // Predicated region
  $region2: #{negpck_loss.1} parent=0 // pred_check
    _
  $region3: #{negpck_loss.1} parent=0 // pred_check_branch
    %17 = sbr.rel (0) target = $region5
  $region4: #{negpck_loss.1} parent=0 // pred_region
    _
  $region5: #{negpck_loss.1} parent=0 // pred_fallthru
    _
  // Predicated region
  $region6: #{negpck_loss.1} parent=0 // pred_check
    _
  $region7: #{negpck_loss.1} parent=0 // pred_check_branch
    %19 = sbr.rel (0) target = $region9
  $region8: #{negpck_loss.1} parent=0 // pred_region
    _
  $region9: #{negpck_loss.1} parent=0 // pred_fallthru
    _
  // Predicated region
  $region10: #{negpck_loss.1} parent=0 // pred_check
    _
  $region11: #{negpck_loss.1} parent=0 // pred_check_branch
    %21 = sbr.rel (0) target = $region13
  $region12: #{negpck_loss.1} parent=0 // pred_region
    _
  $region13: #{negpck_loss.1} parent=0 // pred_fallthru
    _
  // Predicated region
  $region14: #{negpck_loss.1} parent=0 // pred_check
    _
  $region15: #{negpck_loss.1} parent=0 // pred_check_branch
    %23 = sbr.rel (0) target = $region17
  $region16: #{negpck_loss.1} parent=0 // pred_region
    _
  $region17: #{negpck_loss.1} parent=0 // pred_fallthru
    _
  // Predicated region
  $region18: #{negpck_loss.1} parent=0 // pred_check
    _
  $region19: #{negpck_loss.1} parent=0 // pred_check_branch
    %25 = sbr.rel (0) target = $region21
  $region20: #{negpck_loss.1} parent=0 // pred_region
    _
  $region21: #{negpck_loss.1} parent=0 // pred_fallthru
    _
  // Predicated region
  $region22: #{negpck_loss.1} parent=0 // pred_check
    _
  $region23: #{negpck_loss.1} parent=0 // pred_check_branch
    %27 = sbr.rel (0) target = $region25
  $region24: #{negpck_loss.1} parent=0 // pred_region
    _
  $region25: #{negpck_loss.1} parent=0 // pred_fallthru
    _
  // Predicated region
  $region26: #{negpck_loss.1} parent=0 // pred_check
    _
  $region27: #{negpck_loss.1} parent=0 // pred_check_branch
    %29 = sbr.rel (0) target = $region29
  $region28: #{negpck_loss.1} parent=0 // pred_region
    _
  $region29: #{negpck_loss.1} parent=0 // pred_fallthru
    _
  // Predicated region
  $region30: #{negpck_loss.1} parent=0 // pred_check
    _
  $region31: #{negpck_loss.1} parent=0 // pred_check_branch
    %31 = sbr.rel (0) target = $region33
  $region32: #{negpck_loss.1} parent=0 // pred_region
    _
  $region33: #{negpck_loss.1} parent=0 // pred_fallthru
    _
  // Predicated region
  $region34: #{negpck_loss.1} parent=0 // pred_check
    _
  $region35: #{negpck_loss.1} parent=0 // pred_check_branch
    %33 = sbr.rel (0) target = $region37
  $region36: #{negpck_loss.1} parent=0 // pred_region
    _
  $region37: #{negpck_loss.1} parent=0 // pred_fallthru
    _
  %v35 = vld [vmem:[%s0] sm:$0xff]
  %v36 = vld [vmem:[%s0 + $0x8] sm:$0xff]
  %v37 = vld [vmem:[%s0 + $0x10] sm:$0xff]
  %v38 = vld [vmem:[%s0 + $0x18] sm:$0xff]
  %v39 = vpack.c.bf16 %v37, %v35
  %v40 = vpack.c.bf16 %v38, %v36
  %v41 = vld [vmem:[%s1] sm:$0xff]
  %v42 = vld [vmem:[%s1 + $0x8] sm:$0xff]
  %v43 = vld [vmem:[%s1 + $0x10] sm:$0xff]
  %v44 = vld [vmem:[%s1 + $0x18] sm:$0xff]
  %v45 = vpack.c.bf16 %v43, %v41
  %v46 = vpack.c.bf16 %v44, %v42
  %v47 = vld [vmem:[%s2] sm:$0xf]
  %v48 = vld [vmem:[%s2 + $0x4] sm:$0xf]
  %v49 = vld [vmem:[%s2 + $0x8] sm:$0xf]
  %v50 = vld [vmem:[%s2 + $0xc] sm:$0xf]
  %v51 = vld [vmem:[%s2 + $0x10] sm:$0xf]
  %v52 = vld [vmem:[%s2 + $0x14] sm:$0xf]
  %v53 = vld [vmem:[%s2 + $0x18] sm:$0xf]
  %v54 = vld [vmem:[%s2 + $0x1c] sm:$0xf]
  %v55 = vld [vmem:[%s2 + $0x20] sm:$0xf]
  %v56 = vld [vmem:[%s2 + $0x24] sm:$0xf]
  %v57 = vld [vmem:[%s2 + $0x28] sm:$0xf]
  %v58 = vld [vmem:[%s2 + $0x2c] sm:$0xf]
  %v59 = vld [vmem:[%s2 + $0x30] sm:$0xf]
  %v60 = vld [vmem:[%s2 + $0x34] sm:$0xf]
  %v61 = vld [vmem:[%s2 + $0x38] sm:$0xf]
  %v62 = vld [vmem:[%s2 + $0x3c] sm:$0xf]
  %v63 = vld [vmem:[%s2 + $0x40] sm:$0xf]
  %v64 = vld [vmem:[%s2 + $0x44] sm:$0xf]
  %v65 = vld [vmem:[%s2 + $0x48] sm:$0x7]
  %v66 = vld [vmem:[%s3] sm:$0xf]
  %v67 = vld [vmem:[%s3 + $0x4] sm:$0xf]
  %v68 = vld [vmem:[%s3 + $0x8] sm:$0xf]
  %v69 = vld [vmem:[%s3 + $0xc] sm:$0xf]
  %v70 = vld [vmem:[%s3 + $0x10] sm:$0xf]
  %v71 = vld [vmem:[%s3 + $0x14] sm:$0xf]
  %v72 = vld [vmem:[%s3 + $0x18] sm:$0xf]
  %v73 = vld [vmem:[%s3 + $0x1c] sm:$0xf]
  %v74 = vld [vmem:[%s3 + $0x20] sm:$0xf]
  %v75 = vld [vmem:[%s3 + $0x24] sm:$0xf]
  %v76 = vld [vmem:[%s3 + $0x28] sm:$0xf]
  %v77 = vld [vmem:[%s3 + $0x2c] sm:$0xf]
  %v78 = vld [vmem:[%s3 + $0x30] sm:$0xf]
  %v79 = vld [vmem:[%s3 + $0x34] sm:$0xf]
  %v80 = vld [vmem:[%s3 + $0x38] sm:$0xf]
  %v81 = vld [vmem:[%s3 + $0x3c] sm:$0xf]
  %v82 = vld [vmem:[%s3 + $0x40] sm:$0xf]
  %v83 = vld [vmem:[%s3 + $0x44] sm:$0xf]
  %v84 = vld [vmem:[%s3 + $0x48] sm:$0x7]
  %v104 = vunpack.c.l.b16 %v66
  %v105 = vunpack.c.l.b16 %v67
  %v106 = vunpack.c.l.b16 %v68
  %v107 = vunpack.c.l.b16 %v69
  %v108 = vunpack.c.l.b16 %v70
  %v109 = vunpack.c.l.b16 %v71
  %v110 = vunpack.c.l.b16 %v72
  %v111 = vunpack.c.l.b16 %v73
  %v112 = vunpack.c.l.b16 %v74
  %v113 = vunpack.c.l.b16 %v75
  %v114 = vunpack.c.l.b16 %v76
  %v115 = vunpack.c.l.b16 %v77
  %v116 = vunpack.c.l.b16 %v78
  %v117 = vunpack.c.l.b16 %v79
  %v118 = vunpack.c.l.b16 %v80
  %v119 = vunpack.c.l.b16 %v81
  %v120 = vunpack.c.l.b16 %v82
  %v121 = vunpack.c.l.b16 %v83
  %v122 = vunpack.c.l.b16 %v84
  %v123 = vpack.c.b16 %v105, %v104
  %v124 = vpack.c.b16 %v107, %v106
  %v125 = vpack.c.b16 %v109, %v108
  %v126 = vpack.c.b16 %v111, %v110
  %v127 = vpack.c.b16 %v113, %v112
  %v128 = vpack.c.b16 %v115, %v114
  %v129 = vpack.c.b16 %v117, %v116
  %v130 = vpack.c.b16 %v119, %v118
  %v131 = vpack.c.b16 %v121, %v120
  %v132 = vpack.c.b16 %v122, %v122
  %vm142 = vcmask 179200
  %v144 = vsel %vm142, %v46, 0
  %vm146 = vcmask 1042432
  %v148 = vsel %vm146, %v132, 0
  %150 = vmatprep.subr.bf16.mxu0 0
  %151 = vmatpush1.bf16.msra.mxu0 %v123
  %152 = vmatprep.subr.bf16.mxu0 0
  %153 = vmatpush1.bf16.msra.mxu0 %v124
  %154 = vmatprep.subr.bf16.mxu0 0
  %155 = vmatpush1.bf16.msra.mxu0 %v125
  %156 = vmatprep.subr.bf16.mxu0 0
  %157 = vmatpush1.bf16.msra.mxu0 %v126
  %158 = vmatprep.subr.bf16.mxu0 0
  %159 = vmatpush1.bf16.msra.mxu0 %v127
  %160 = vmatprep.subr.bf16.mxu0 0
  %161 = vmatpush1.bf16.msra.mxu0 %v128
  %162 = vmatprep.subr.bf16.mxu0 0
  %163 = vmatpush1.bf16.msra.mxu0 %v129
  %164 = vmatprep.subr.bf16.mxu0 0
  %165 = vmatpush1.bf16.msra.mxu0 %v130
  %166 = vmatprep.subr.bf16.mxu0 0
  %167 = vmatpush1.bf16.msra.mxu0 %v131
  %168 = vmatprep.subr.bf16.mxu0 0
  %169 = vmatpush1.bf16.msra.mxu0 %v148
  %170 = vmatprep.subr.bf16.mxu0 0
  %171 = vmatpush1.bf16.msra.mxu0 0
  %172 = vmatprep.subr.bf16.mxu0 0
  %173 = vmatpush1.bf16.msra.mxu0 0
  %174 = vmatprep.subr.bf16.mxu0 0
  %175 = vmatpush1.bf16.msra.mxu0 0
  %176 = vmatprep.subr.bf16.mxu0 0
  %177 = vmatpush1.bf16.msra.mxu0 0
  %178 = vmatprep.subr.bf16.mxu0 0
  %179 = vmatpush1.bf16.msra.mxu0 0
  %180 = vmatprep.subr.bf16.mxu0 0
  %181 = vmatpush1.bf16.msra.mxu0 0
  %182 = vmatprep.mubr.bf16.mxu0 %v144
  %183 = vmatmul.mubr.bf16.gmra.mrb[0].mxu0 %v45
  %v184 = vpop.f32.mrb[0].mxu0
  %v185 = vadd.f32 0.0, %v184
  %v186 = vpop.f32.mrb[0].mxu0
  %v187 = vpop.f32.mrb[0].mxu0
  %v188 = vadd.f32 0.0, %v187
  %v189 = vpop.f32.mrb[0].mxu0
  %190 = vdwg.mxu0
  %v210 = vunpack.c.l.b16 %v47
  %v211 = vunpack.c.l.b16 %v48
  %v212 = vunpack.c.l.b16 %v49
  %v213 = vunpack.c.l.b16 %v50
  %v214 = vunpack.c.l.b16 %v51
  %v215 = vunpack.c.l.b16 %v52
  %v216 = vunpack.c.l.b16 %v53
  %v217 = vunpack.c.l.b16 %v54
  %v218 = vunpack.c.l.b16 %v55
  %v219 = vunpack.c.l.b16 %v56
  %v220 = vunpack.c.l.b16 %v57
  %v221 = vunpack.c.l.b16 %v58
  %v222 = vunpack.c.l.b16 %v59
  %v223 = vunpack.c.l.b16 %v60
  %v224 = vunpack.c.l.b16 %v61
  %v225 = vunpack.c.l.b16 %v62
  %v226 = vunpack.c.l.b16 %v63
  %v227 = vunpack.c.l.b16 %v64
  %v228 = vunpack.c.l.b16 %v65
  %v229 = vpack.c.b16 %v211, %v210
  %v230 = vpack.c.b16 %v213, %v212
  %v231 = vpack.c.b16 %v215, %v214
  %v232 = vpack.c.b16 %v217, %v216
  %v233 = vpack.c.b16 %v219, %v218
  %v234 = vpack.c.b16 %v221, %v220
  %v235 = vpack.c.b16 %v223, %v222
  %v236 = vpack.c.b16 %v225, %v224
  %v237 = vpack.c.b16 %v227, %v226
  %v238 = vpack.c.b16 %v228, %v228
  %v249 = vsel %vm142, %v40, 0
  %v252 = vsel %vm146, %v238, 0
  %254 = vmatprep.subr.bf16.mxu0 0
  %255 = vmatpush1.bf16.msra.mxu0 %v229
  %256 = vmatprep.subr.bf16.mxu0 0
  %257 = vmatpush1.bf16.msra.mxu0 %v230
  %258 = vmatprep.subr.bf16.mxu0 0
  %259 = vmatpush1.bf16.msra.mxu0 %v231
  %260 = vmatprep.subr.bf16.mxu0 0
  %261 = vmatpush1.bf16.msra.mxu0 %v232
  %262 = vmatprep.subr.bf16.mxu0 0
  %263 = vmatpush1.bf16.msra.mxu0 %v233
  %264 = vmatprep.subr.bf16.mxu0 0
  %265 = vmatpush1.bf16.msra.mxu0 %v234
  %266 = vmatprep.subr.bf16.mxu0 0
  %267 = vmatpush1.bf16.msra.mxu0 %v235
  %268 = vmatprep.subr.bf16.mxu0 0
  %269 = vmatpush1.bf16.msra.mxu0 %v236
  %270 = vmatprep.subr.bf16.mxu0 0
  %271 = vmatpush1.bf16.msra.mxu0 %v237
  %272 = vmatprep.subr.bf16.mxu0 0
  %273 = vmatpush1.bf16.msra.mxu0 %v252
  %274 = vmatprep.subr.bf16.mxu0 0
  %275 = vmatpush1.bf16.msra.mxu0 0
  %276 = vmatprep.subr.bf16.mxu0 0
  %277 = vmatpush1.bf16.msra.mxu0 0
  %278 = vmatprep.subr.bf16.mxu0 0
  %279 = vmatpush1.bf16.msra.mxu0 0
  %280 = vmatprep.subr.bf16.mxu0 0
  %281 = vmatpush1.bf16.msra.mxu0 0
  %282 = vmatprep.subr.bf16.mxu0 0
  %283 = vmatpush1.bf16.msra.mxu0 0
  %284 = vmatprep.subr.bf16.mxu0 0
  %285 = vmatpush1.bf16.msra.mxu0 0
  %286 = vmatprep.mubr.bf16.mxu0 %v249
  %287 = vmatmul.mubr.bf16.gmra.mrb[0].mxu0 %v39
  %v288 = vpop.f32.mrb[0].mxu0
  %v289 = vadd.f32 %v185, %v288
  %v290 = vpop.f32.mrb[0].mxu0
  %v291 = vpop.f32.mrb[0].mxu0
  %v292 = vadd.f32 %v188, %v291
  %v293 = vpop.f32.mrb[0].mxu0
  %294 = vdwg.mxu0
  %v295 = vld [vmem:[%s4] sm:$0x1]
  %v297 = vlaneseq
  %v298 = vshrl.u32 %v297, 7
  %v299 = vsub.s32 0, %v298
  %v300 = vrot.slane %v295, %v299
  %v302 = vadd.f32 %v289, %v300
  %v303 = vadd.f32 %v292, %v300
  %v304 = vmax.f32 %v302, 0.0
  %v305 = vmax.f32 %v303, 0.0
  %v306 = vpack.c.bf16 %v305, %v304
  %v307 = vld [vmem:[%s5] sm:$0xf]
  %v308 = vld [vmem:[%s5 + $0x4] sm:$0xf]
  %v309 = vld [vmem:[%s5 + $0x8] sm:$0xf]
  %v310 = vld [vmem:[%s5 + $0xc] sm:$0xf]
  %v311 = vld [vmem:[%s5 + $0x10] sm:$0xf]
  %v312 = vld [vmem:[%s5 + $0x14] sm:$0xf]
  %v313 = vld [vmem:[%s5 + $0x18] sm:$0xf]
  %v314 = vld [vmem:[%s5 + $0x1c] sm:$0xf]
  %v315 = vld [vmem:[%s5 + $0x20] sm:$0xf]
  %v316 = vld [vmem:[%s5 + $0x24] sm:$0xf]
  %v317 = vld [vmem:[%s5 + $0x28] sm:$0xf]
  %v318 = vld [vmem:[%s5 + $0x2c] sm:$0xf]
  %v319 = vld [vmem:[%s5 + $0x30] sm:$0xf]
  %v320 = vld [vmem:[%s5 + $0x34] sm:$0xf]
  %v321 = vld [vmem:[%s5 + $0x38] sm:$0xf]
  %v322 = vld [vmem:[%s5 + $0x3c] sm:$0xf]
  %v323 = vld [vmem:[%s6] sm:$0x1]
  %v325 = vlaneseq
  %v326 = vshrl.u32 %v325, 7
  %v327 = vsub.s32 0, %v326
  %v328 = vrot.slane %v323, %v327
  %v346 = vunpack.c.l.b16 %v307
  %v347 = vunpack.c.l.b16 %v308
  %v348 = vunpack.c.l.b16 %v309
  %v349 = vunpack.c.l.b16 %v310
  %v350 = vunpack.c.l.b16 %v311
  %v351 = vunpack.c.l.b16 %v312
  %v352 = vunpack.c.l.b16 %v313
  %v353 = vunpack.c.l.b16 %v314
  %v354 = vunpack.c.l.b16 %v315
  %v355 = vunpack.c.l.b16 %v316
  %v356 = vunpack.c.l.b16 %v317
  %v357 = vunpack.c.l.b16 %v318
  %v358 = vunpack.c.l.b16 %v319
  %v359 = vunpack.c.l.b16 %v320
  %v360 = vunpack.c.l.b16 %v321
  %v361 = vunpack.c.l.b16 %v322
  %v362 = vpack.c.b16 %v347, %v346
  %v363 = vpack.c.b16 %v349, %v348
  %v364 = vpack.c.b16 %v351, %v350
  %v365 = vpack.c.b16 %v353, %v352
  %v366 = vpack.c.b16 %v355, %v354
  %v367 = vpack.c.b16 %v357, %v356
  %v368 = vpack.c.b16 %v359, %v358
  %v369 = vpack.c.b16 %v361, %v360
  %378 = vmatprep.subr.bf16.mxu0 0
  %379 = vmatpush1.bf16.msra.mxu0 %v362
  %380 = vmatprep.subr.bf16.mxu0 0
  %381 = vmatpush1.bf16.msra.mxu0 %v363
  %382 = vmatprep.subr.bf16.mxu0 0
  %383 = vmatpush1.bf16.msra.mxu0 %v364
  %384 = vmatprep.subr.bf16.mxu0 0
  %385 = vmatpush1.bf16.msra.mxu0 %v365
  %386 = vmatprep.subr.bf16.mxu0 0
  %387 = vmatpush1.bf16.msra.mxu0 %v366
  %388 = vmatprep.subr.bf16.mxu0 0
  %389 = vmatpush1.bf16.msra.mxu0 %v367
  %390 = vmatprep.subr.bf16.mxu0 0
  %391 = vmatpush1.bf16.msra.mxu0 %v368
  %392 = vmatprep.subr.bf16.mxu0 0
  %393 = vmatpush1.bf16.msra.mxu0 %v369
  %394 = vmatprep.subr.bf16.mxu0 0
  %395 = vmatpush1.bf16.msra.mxu0 0
  %396 = vmatprep.subr.bf16.mxu0 0
  %397 = vmatpush1.bf16.msra.mxu0 0
  %398 = vmatprep.subr.bf16.mxu0 0
  %399 = vmatpush1.bf16.msra.mxu0 0
  %400 = vmatprep.subr.bf16.mxu0 0
  %401 = vmatpush1.bf16.msra.mxu0 0
  %402 = vmatprep.subr.bf16.mxu0 0
  %403 = vmatpush1.bf16.msra.mxu0 0
  %404 = vmatprep.subr.bf16.mxu0 0
  %405 = vmatpush1.bf16.msra.mxu0 0
  %406 = vmatprep.subr.bf16.mxu0 0
  %407 = vmatpush1.bf16.msra.mxu0 0
  %408 = vmatprep.subr.bf16.mxu0 0
  %409 = vmatpush1.bf16.msra.mxu0 0
  %410 = vmatprep.mubr.bf16.mxu0 0
  %411 = vmatmul.mubr.bf16.gmra.mrb[0].mxu0 %v306
  %v412 = vpop.f32.mrb[0].mxu0
  %v413 = vadd.f32 %v328, %v412
  %v414 = vpop.f32.mrb[0].mxu0
  %v415 = vpop.f32.mrb[0].mxu0
  %v416 = vadd.f32 %v328, %v415
  %v417 = vpop.f32.mrb[0].mxu0
  %418 = vdwg.mxu0
  %v419 = vmax.f32 %v413, 0.0
  %v420 = vmax.f32 %v416, 0.0
  %v421 = vld [vmem:[%s7] sm:$0x1]
  %v423 = vlaneseq
  %v424 = vshrl.u32 %v423, 7
  %v425 = vsub.s32 0, %v424
  %v426 = vrot.slane %v421, %v425
  %v428 = vmul.f32 %v419, %v426
  %v429 = vmul.f32 %v420, %v426
  %430 = vadd.xlane.f32.xlu0 %v428
  %v431 = vpop.xlane.xlu0 %430
  %432 = vadd.xlane.f32.xlu0 %v429
  %v433 = vpop.xlane.xlu0 %432
  %v434 = vld [vmem:[#allocation2] sm:$0x1]
  %s435 = vtos %v434
  %v436 = vstv %s435
  %v437 = vadd.f32 %v431, %v436
  %v438 = vadd.f32 %v433, %v436
  %v439 = vxor.u32 %v437, 2147483648
  %v440 = vxor.u32 %v438, 2147483648
  %v441 = vmul.f32 %v439, 1.442695
  %v442 = vpow.pop %v441
  %v443 = vmul.f32 %v440, 1.442695
  %v444 = vpow.pop %v443
  %v445 = vadd.f32 %v442, 1.0
  %v446 = vadd.f32 %v444, 1.0
  %v447 = vrcp.pop %v445
  %v448 = vmul.f32 1.0, %v447
  %v449 = vrcp.pop %v446
  %v450 = vmul.f32 1.0, %v449
  %vm451 = vcmask 7168
  %v452 = vsel %vm451, %v448, 0.0
  %v453 = vsel %vm451, %v450, 0.0
  %v454 = vadd.f32 %v452, %v453
  %455 = vadd.xlane.f32.xlu0 %v454
  %v456 = vpop.xlane.xlu0 %455
  %v457 = vrot.slane %v456, 4
  %v458 = vadd.f32 %v456, %v457
  %v459 = vrot.slane %v458, 2
  %v460 = vadd.f32 %v458, %v459
  %v461 = vrot.slane %v460, 1
  %v462 = vadd.f32 %v460, %v461
  %s463 = vtos %v462
  %v464 = vstv %s463
  %465 = vst [vmem:[%s9] sm:$0xff] %v464
  // Predicated region
  $region38: #{negpck_loss.1} parent=0 // pred_check
    _
  $region39: #{negpck_loss.1} parent=0 // pred_check_branch
    %467 = sbr.rel (0) target = $region41
  $region40: #{negpck_loss.1} parent=0 // pred_region
    _
  $region41: #{negpck_loss.1} parent=0 // pred_fallthru
    _
  // Predicated region
  $region42: #{negpck_loss.1} parent=0 // pred_check
    _
  $region43: #{negpck_loss.1} parent=0 // pred_check_branch
    %469 = sbr.rel (0) target = $region45
  $region44: #{negpck_loss.1} parent=0 // pred_region
    _
  $region45: #{negpck_loss.1} parent=0 // pred_fallthru
    _

</llo_original>
